<compile_context>
chip_gen: v6e
topology: v6e:2x2x1
jax: 0.10.0
libtpu: 0.0.40
codegen_flags: <defaults>
</compile_context>

<pallas_src>
import functools
import math

import jax
import jax.numpy as jnp
from jax.experimental import pallas as pl
from jax.experimental.pallas import tpu as pltpu

OMEGA = 14.0
THETA = 0.5
EPSILON = 1.0
ALPHA = 2.1

_LN_TH = math.log(THETA / EPSILON)     # ln(theta/eps), folded at trace time
_INV_EPS = 1.0 / EPSILON
_A_COEF = OMEGA / THETA                # omega * (theta/eps)^(-1) * (1/eps) folded with pw

LANES = 128
MAX_BLOCK_ROWS = 1024                  # (1024,128) f32 tile = 512 KiB; 2 in x 2 buf = 2 MiB VMEM


def _cdiv(a, b):
    return -(-a // b)


def _round_up(x, m):
    return ((x + m - 1) // m) * m


def _detect_multi_tensorcore():
    # v7x exposes 2 TensorCores per chip; v5e/v6e have 1. (v4/v5p megacore is
    # already handled by plain "parallel" semantics, so no special case.)
    try:
        kind = jax.devices()[0].device_kind.lower()
    except Exception:
        return False
    return ("v7" in kind) or ("tpu7" in kind)


_MULTI_TC = _detect_multi_tensorcore()


def _awing_partial_sum_kernel(pred_ref, targ_ref, out_ref, acc_ref, *,
                              rows, block_rows, blocks_per_slice,
                              total_blocks, has_tail, has_dups):
    """Accumulates the per-slice sum of element-wise adaptive wing loss."""
    c = pl.program_id(0)   # slice (parallel / core-parallel axis)
    i = pl.program_id(1)   # block within slice (reduction axis)

    @pl.when(i == 0)
    def _():
        acc_ref[...] = jnp.zeros_like(acc_ref)

    b_logical = c * blocks_per_slice + i

    def accumulate(mask_tail):
        p = pred_ref[...].astype(jnp.float32)
        t = targ_ref[...].astype(jnp.float32)

        delta = jnp.abs(t - p)
        expo = ALPHA - t                       # (alpha - y) > 0 for heatmap targets

        # Select the transcendental *argument*, then one log / exp / log1p / recip:
        #   branch1 (delta <  theta): pw = (delta/eps)^expo, loss = omega*log1p(pw)
        #   branch2 (delta >= theta): pw = (theta/eps)^expo,
        #       A = (omega/theta) * expo * pw / (1 + pw)
        #       loss = A*(delta - theta) + omega*log1p(pw)
        d_scaled = delta if EPSILON == 1.0 else delta * _INV_EPS
        z = jnp.where(delta < THETA, jnp.log(d_scaled), _LN_TH)
        pw = jnp.exp(expo * z)
        lp = jnp.log1p(pw)
        a_lin = (_A_COEF * expo) * pw * pl.reciprocal(1.0 + pw, approx=True)
        loss = OMEGA * lp + jnp.where(delta < THETA, 0.0, a_lin * (delta - THETA))

        if mask_tail:
            # Zero rows past the true row count. jnp.where is a true select, so
            # NaN/Inf from garbage rows never reaches the accumulator.
            row_local = jax.lax.broadcasted_iota(jnp.int32, (block_rows, LANES), 0)
            global_row = b_logical * block_rows + row_local
            loss = jnp.where(global_row < rows, loss, 0.0)

        # Fold (block_rows, 128) -> (8, 128): pure VPU adds into VMEM accumulator.
        acc_ref[...] += loss.reshape(block_rows // 8, 8, LANES).sum(axis=0)

    if has_tail:
        # Full real blocks: no mask. Tail block: masked. Clamped duplicate
        # blocks (b_logical >= total_blocks, only possible with 2 slices)
        # match neither predicate and are skipped entirely.
        @pl.when(b_logical < total_blocks - 1)
        def _():
            accumulate(mask_tail=False)

        @pl.when(b_logical == total_blocks - 1)
        def _():
            accumulate(mask_tail=True)
    elif has_dups:
        @pl.when(b_logical < total_blocks)
        def _():
            accumulate(mask_tail=False)
    else:
        accumulate(mask_tail=False)

    # Single cross-lane reduce + SMEM scalar store only once per slice.
    @pl.when(i == pl.num_programs(1) - 1)
    def _():
        out_ref[0, 0] = jnp.sum(acc_ref[...])


@functools.partial(jax.jit, static_argnames=("reduction",))
def adaptive_wing_loss(pred, target, reduction="mean"):
    assert pred.shape == target.shape
    numel = pred.size
    # TODO(synk): handle element counts not divisible by 128 (pad lane dim).
    assert numel % LANES == 0, "total element count must be a multiple of 128"
    rows = numel // LANES

    # Keep native dtype (kernel casts to f32) — no extra HBM round trip.
    p2 = pred.reshape(rows, LANES)
    t2 = target.reshape(rows, LANES)

    block_rows = min(MAX_BLOCK_ROWS, _round_up(rows, 8))
    total_blocks = _cdiv(rows, block_rows)

    # Two slices only when a second TensorCore can actually run them in
    # parallel (v7x) and there is enough work; otherwise a single slice so
    # single-TC chips never execute clamped-duplicate steps.
    num_slices = 2 if (_MULTI_TC and total_blocks >= 2) else 1
    blocks_per_slice = _cdiv(total_blocks, num_slices)
    has_dups = (num_slices * blocks_per_slice) != total_blocks
    has_tail = (total_blocks * block_rows) != rows

    kernel = functools.partial(
        _awing_partial_sum_kernel,
        rows=rows,
        block_rows=block_rows,
        blocks_per_slice=blocks_per_slice,
        total_blocks=total_blocks,
        has_tail=has_tail,
        has_dups=has_dups,
    )

    def in_map(c, i):
        # Clamp so the DMA never targets a block past the array; the kernel
        # skips compute for such (duplicate) steps.
        return (jnp.minimum(c * blocks_per_slice + i, total_blocks - 1), 0)

    if _MULTI_TC and num_slices == 2:
        dim_sem = (pltpu.CORE_PARALLEL, pltpu.ARBITRARY)
    else:
        dim_sem = ("parallel", "arbitrary")

    itemsize = jnp.dtype(pred.dtype).itemsize
    cost = pl.CostEstimate(
        flops=14 * numel,
        transcendentals=4 * numel,
        bytes_accessed=2 * numel * itemsize + num_slices * 4,
    )

    # TODO(synk): on v5e (purely HBM-bound) consider pipeline_mode=pl.Buffered(3)
    # on the two input specs and/or bf16 inputs to cut bytes moved.
    partial_sums = pl.pallas_call(
        kernel,
        out_shape=jax.ShapeDtypeStruct((num_slices, 1), jnp.float32),
        grid_spec=pltpu.PrefetchScalarGridSpec(
            num_scalar_prefetch=0,
            grid=(num_slices, blocks_per_slice),
            in_specs=[
                pl.BlockSpec((block_rows, LANES), in_map),
                pl.BlockSpec((block_rows, LANES), in_map),
            ],
            out_specs=pl.BlockSpec((1, 1), lambda c, i: (c, 0),
                                   memory_space=pltpu.SMEM),
            scratch_shapes=[pltpu.VMEM((8, LANES), jnp.float32)],
        ),
        compiler_params=pltpu.CompilerParams(dimension_semantics=dim_sem),
        cost_estimate=cost,
    )(p2, t2)

    loss_sum = jnp.sum(partial_sums)
    if reduction == "mean":
        return loss_sum / jnp.float32(numel)
    # Matches the PyTorch module: any non-'mean' reduction returns the sum.
    return loss_sum


def _reference(pred, target):
    # Pure-JAX reference matching the PyTorch forward ('mean' reduction).
    p = pred.astype(jnp.float32)
    t = target.astype(jnp.float32)
    delta = jnp.abs(t - p)
    expo = ALPHA - t
    loss1 = OMEGA * jnp.log1p(jnp.power(delta / EPSILON, expo))
    th = THETA / EPSILON
    A = (OMEGA * (1.0 / (1.0 + jnp.power(th, expo))) * expo
         * jnp.power(th, expo - 1.0) / EPSILON)
    C = THETA * A - OMEGA * jnp.log1p(jnp.power(th, expo))
    loss2 = A * delta - C
    loss = jnp.where(delta < THETA, loss1, loss2)
    return jnp.mean(loss)


if __name__ == "__main__":
    key = jax.random.PRNGKey(0)
    k1, k2, k3, k4 = jax.random.split(key, 4)

    # Heatmap-regression style inputs: N=2, C=4 (landmarks), H=W=16.
    pred = jax.random.uniform(k1, (2, 4, 16, 16), dtype=jnp.float32)
    target = jax.random.uniform(k2, (2, 4, 16, 16), dtype=jnp.float32)
    out = adaptive_wing_loss(pred, target, reduction="mean")
    out = jax.block_until_ready(out)
    ref = _reference(pred, target)
    assert jnp.allclose(out, ref, rtol=2e-3, atol=2e-3), (out, ref)

    # Second check exercises the multi-block + masked-tail path
    # (rows = 1152 -> one full 1024-row block plus a partial tail block).
    pred2 = jax.random.uniform(k3, (4, 8, 64, 72), dtype=jnp.float32)
    target2 = jax.random.uniform(k4, (4, 8, 64, 72), dtype=jnp.float32)
    out2 = adaptive_wing_loss(pred2, target2, reduction="mean")
    out2 = jax.block_until_ready(out2)
    ref2 = _reference(pred2, target2)
    assert jnp.allclose(out2, ref2, rtol=2e-3, atol=2e-3), (out2, ref2)

    print("KERNEL_OK")
</pallas_src>

<mosaic_0001>
module attributes {stable_mosaic.version = 11 : i64} {
  func.func @_awing_partial_sum_kernel(%arg0: i32, %arg1: i32, %arg2: memref<16x128xf32, #tpu.memory_space<vmem>>, %arg3: memref<16x128xf32, #tpu.memory_space<vmem>>, %arg4: memref<1x1xf32, #tpu.memory_space<smem>>, %arg5: memref<8x128xf32, #tpu.memory_space<vmem>>) attributes {dimension_semantics = [#tpu.dimension_semantics<parallel>, #tpu.dimension_semantics<arbitrary>], iteration_bounds = array<i64: 1, 1>, scalar_prefetch = 0 : i64, scratch_operands = 1 : i64, tpu.core_type = #tpu.core_type<tc>, window_params = [{transform_indices = @transform_0, window_bounds = array<i64: 16, 128>}, {transform_indices = @transform_1, window_bounds = array<i64: 16, 128>}, {transform_indices = @transform_2, window_bounds = array<i64: 1, 1>}]} {
    %c0_i32 = arith.constant 0 : i32
    %0 = arith.cmpi eq, %arg1, %c0_i32 : i32
    %1 = arith.extui %0 : i1 to i32
    %c0_i32_0 = arith.constant 0 : i32
    %2 = arith.cmpi ne, %1, %c0_i32_0 : i32
    scf.if %2 {
      %cst_19 = arith.constant 0.000000e+00 : f32
      %42 = vector.broadcast %cst_19 : f32 to vector<8x128xf32>
      %c0_20 = arith.constant 0 : index
      %c0_21 = arith.constant 0 : index
      %43 = vector.load %arg5[%c0_20, %c0_21] : memref<8x128xf32, #tpu.memory_space<vmem>>, vector<8x128xf32>
      tpu.vector_store %arg5[%c0_20, %c0_21], %42 {strides = array<i32>} : memref<8x128xf32, #tpu.memory_space<vmem>>, vector<8x128xf32>,
    } else {
    }
    %c0 = arith.constant 0 : index
    %c0_1 = arith.constant 0 : index
    %3 = vector.load %arg2[%c0, %c0_1] : memref<16x128xf32, #tpu.memory_space<vmem>>, vector<16x128xf32>
    %c0_2 = arith.constant 0 : index
    %c0_3 = arith.constant 0 : index
    %4 = vector.load %arg3[%c0_2, %c0_3] : memref<16x128xf32, #tpu.memory_space<vmem>>, vector<16x128xf32>
    %5 = arith.subf %4, %3 : vector<16x128xf32>
    %6 = math.absf %5 : vector<16x128xf32>
    %cst = arith.constant 2.100000e+00 : f32
    %7 = vector.broadcast %cst : f32 to vector<16x128xf32>
    %8 = arith.subf %7, %4 : vector<16x128xf32>
    %cst_4 = arith.constant 5.000000e-01 : f32
    %9 = vector.broadcast %cst_4 : f32 to vector<16x128xf32>
    %10 = arith.cmpf olt, %6, %9 : vector<16x128xf32>
    %11 = math.log %6 : vector<16x128xf32>
    %cst_5 = arith.constant -0.693147182 : f32
    %12 = vector.broadcast %cst_5 : f32 to vector<16x128xf32>
    %13 = arith.select %10, %11, %12 : vector<16x128xi1>, vector<16x128xf32>
    %14 = arith.mulf %8, %13 : vector<16x128xf32>
    %15 = math.exp %14 : vector<16x128xf32>
    %16 = math.log1p %15 : vector<16x128xf32>
    %cst_6 = arith.constant 2.800000e+01 : f32
    %17 = vector.broadcast %cst_6 : f32 to vector<16x128xf32>
    %18 = arith.mulf %17, %8 : vector<16x128xf32>
    %19 = arith.mulf %18, %15 : vector<16x128xf32>
    %cst_7 = arith.constant 1.000000e+00 : f32
    %20 = vector.broadcast %cst_7 : f32 to vector<16x128xf32>
    %21 = arith.addf %20, %15 : vector<16x128xf32>
    %22 = tpu.reciprocal %21 {approx = true} : vector<16x128xf32> -> vector<16x128xf32>
    %23 = arith.mulf %19, %22 : vector<16x128xf32>
    %cst_8 = arith.constant 1.400000e+01 : f32
    %24 = vector.broadcast %cst_8 : f32 to vector<16x128xf32>
    %25 = arith.mulf %24, %16 : vector<16x128xf32>
    %cst_9 = arith.constant 5.000000e-01 : f32
    %26 = vector.broadcast %cst_9 : f32 to vector<16x128xf32>
    %27 = arith.cmpf olt, %6, %26 : vector<16x128xf32>
    %cst_10 = arith.constant 5.000000e-01 : f32
    %28 = vector.broadcast %cst_10 : f32 to vector<16x128xf32>
    %29 = arith.subf %6, %28 : vector<16x128xf32>
    %30 = arith.mulf %23, %29 : vector<16x128xf32>
    %cst_11 = arith.constant 0.000000e+00 : f32
    %31 = vector.broadcast %cst_11 : f32 to vector<16x128xf32>
    %32 = arith.select %27, %31, %30 : vector<16x128xi1>, vector<16x128xf32>
    %33 = arith.addf %25, %32 : vector<16x128xf32>
    %c0_12 = arith.constant 0 : index
    %c0_13 = arith.constant 0 : index
    %34 = vector.load %arg5[%c0_12, %c0_13] : memref<8x128xf32, #tpu.memory_space<vmem>>, vector<8x128xf32>
    %35 = vector.shape_cast %33 : vector<16x128xf32> to vector<2x8x128xf32>
    %cst_14 = arith.constant dense<0.000000e+00> : vector<8x128xf32>
    %36 = vector.multi_reduction <add>, %35, %cst_14 [0] : vector<2x8x128xf32> to vector<8x128xf32>
    %37 = arith.addf %34, %36 : vector<8x128xf32>
    %c0_15 = arith.constant 0 : index
    %c0_16 = arith.constant 0 : index
    %38 = vector.load %arg5[%c0_15, %c0_16] : memref<8x128xf32, #tpu.memory_space<vmem>>, vector<8x128xf32>
    tpu.vector_store %arg5[%c0_15, %c0_16], %37 {strides = array<i32>} : memref<8x128xf32, #tpu.memory_space<vmem>>, vector<8x128xf32>,
    %c0_i32_17 = arith.constant 0 : i32
    %39 = arith.cmpi eq, %arg1, %c0_i32_17 : i32
    %40 = arith.extui %39 : i1 to i32
    %c0_i32_18 = arith.constant 0 : i32
    %41 = arith.cmpi ne, %40, %c0_i32_18 : i32
    scf.if %41 {
      %c0_19 = arith.constant 0 : index
      %c0_20 = arith.constant 0 : index
      %42 = vector.load %arg5[%c0_19, %c0_20] : memref<8x128xf32, #tpu.memory_space<vmem>>, vector<8x128xf32>
      %43 = vector.shape_cast %42 : vector<8x128xf32> to vector<1x8x128xf32>
      %cst_21 = arith.constant dense<0.000000e+00> : vector<1xf32>
      %44 = vector.multi_reduction <add>, %43, %cst_21 [1, 2] : vector<1x8x128xf32> to vector<1xf32>
      %45 = vector.shape_cast %44 : vector<1xf32> to vector<1x1x1xf32>
      %46 = vector.extract %45[0, 0, 0] : f32 from vector<1x1x1xf32>
      %c0_22 = arith.constant 0 : index
      %c0_23 = arith.constant 0 : index
      %47 = memref.load %arg4[%c0_22, %c0_23] : memref<1x1xf32, #tpu.memory_space<smem>>
      memref.store %46, %arg4[%c0_22, %c0_23] : memref<1x1xf32, #tpu.memory_space<smem>>
    } else {
    }
    return
  }
  func.func @transform_0(%arg0: i32, %arg1: i32) -> (i32, i32) {
    %c1_i32 = arith.constant 1 : i32
    %0 = arith.muli %arg0, %c1_i32 : i32
    %1 = arith.addi %0, %arg1 : i32
    %c0_i32 = arith.constant 0 : i32
    %2 = arith.minsi %1, %c0_i32 : i32
    %c0_i32_0 = arith.constant 0 : i32
    %c0_i32_1 = arith.constant 0 : i32
    return %2, %c0_i32_0 : i32, i32
  }
  func.func @transform_1(%arg0: i32, %arg1: i32) -> (i32, i32) {
    %c1_i32 = arith.constant 1 : i32
    %0 = arith.muli %arg0, %c1_i32 : i32
    %1 = arith.addi %0, %arg1 : i32
    %c0_i32 = arith.constant 0 : i32
    %2 = arith.minsi %1, %c0_i32 : i32
    %c0_i32_0 = arith.constant 0 : i32
    %c0_i32_1 = arith.constant 0 : i32
    return %2, %c0_i32_0 : i32, i32
  }
  func.func @transform_2(%arg0: i32, %arg1: i32) -> (i32, i32) {
    %c0_i32 = arith.constant 0 : i32
    %c0_i32_0 = arith.constant 0 : i32
    return %arg0, %c0_i32 : i32, i32
  }
}

</mosaic_0001>

<llo_original>
// kernel: adaptive_wing_loss.1
$region0: #{adaptive_wing_loss.1}
  #allocation0 [shape = 'u32[]', space=smem, size = 0x4, offset = 0x4, fixed_abs, tag = 'smem constant byte address 0x4 - core index']
  #allocation1 [shape = 'u32[144,128]{1,0:T(1,128)}', space=vmem, size = 0x12000, scoped, tag = 'internal scratch']
  #allocation2 [shape = 'f32[8,128]{1,0:T(8,128)}', space=vmem, size = 0x1000, scoped, tag = 'scratch operand']
  %s0 = inlined_call_operand.vmem [shape: f32[16,128], index: 0, kind: input, shape index: {}]
  %s1 = inlined_call_operand.vmem [shape: f32[16,128], index: 1, kind: input, shape index: {}]
  %s2 = inlined_call_operand.hbm [shape: f32[1,1], index: 2, kind: output, shape index: {}]
  %s3 = sld [smem:[#allocation0]]
  $region26: #{adaptive_wing_loss.1} parent=0
    _
  %s5 = ssub.s32 1, %s3
  %s6 = scalar_select 0, %s5, %s3
  $region1: #{adaptive_wing_loss.1} parent=0
    #allocation3 [shape = 'u8[512]{0}', space=smem, size = 0x200, scoped, tag = 'output window, operand 0, single buffered']
    #allocation4 [shape = 's32[1]{0}', space=sflag, size = 0x4, scoped, tag = 'scoped memory for adaptive_wing_loss.1']
    %7 = vsyncpa [#allocation4], 0
    // Predicated region
    $region2: #{adaptive_wing_loss.1} parent=1 // pred_check
      _
    $region3: #{adaptive_wing_loss.1} parent=1 // pred_check_branch
      %9 = sbr.rel (0) target = $region5
    $region4: #{adaptive_wing_loss.1} parent=1 // pred_region
      %s10 = sadd.s32 0, 0
      %p11 = scmp.lt.s32.totalorder %s10, 0
      %s12 = scalar_select %p11, %s10, 0
      %s13 = smul.u32 2, %s12
      %p14 = scmp.lt.s32.totalorder %s13, 1
      %s15 = scalar_select %p14, %s13, 1
      %s16 = smul.addr %s15, 8
      %s17 = scalar_lea.vmem %s0, %s16
      %s18 = sadd.s32 0, 0
      %p19 = scmp.lt.s32.totalorder %s18, 0
      %s20 = scalar_select %p19, %s18, 0
      %s21 = smul.u32 2, %s20
    $region5: #{adaptive_wing_loss.1} parent=1 // pred_fallthru
      _
    // Predicated region
    $region6: #{adaptive_wing_loss.1} parent=1 // pred_check
      _
    $region7: #{adaptive_wing_loss.1} parent=1 // pred_check_branch
      %23 = sbr.rel (0) target = $region9
    $region8: #{adaptive_wing_loss.1} parent=1 // pred_region
      %s24 = sadd.s32 0, 0
      %p25 = scmp.lt.s32.totalorder %s24, 0
      %s26 = scalar_select %p25, %s24, 0
      %s27 = smul.u32 2, %s26
      %p28 = scmp.lt.s32.totalorder %s27, 1
      %s29 = scalar_select %p28, %s27, 1
      %s30 = smul.addr %s29, 8
      %s31 = scalar_lea.vmem %s1, %s30
      %s32 = sadd.s32 0, 0
      %p33 = scmp.lt.s32.totalorder %s32, 0
      %s34 = scalar_select %p33, %s32, 0
      %s35 = smul.u32 2, %s34
    $region9: #{adaptive_wing_loss.1} parent=1 // pred_fallthru
      _
    %s36 = sadd.s32 0, 0
    %p37 = scmp.lt.s32.totalorder %s36, 0
    %s38 = scalar_select %p37, %s36, 0
    %s39 = smul.u32 2, %s38
    %p40 = scmp.lt.s32.totalorder %s39, 1
    %s41 = scalar_select %p40, %s39, 1
    %s42 = smul.addr %s41, 8
    %s43 = scalar_lea.vmem %s0, %s42
    %s44 = sadd.s32 0, 0
    %p45 = scmp.lt.s32.totalorder %s44, 0
    %s46 = scalar_select %p45, %s44, 0
    %s47 = smul.u32 2, %s46
    %p48 = scmp.lt.s32.totalorder %s47, 1
    %s49 = scalar_select %p48, %s47, 1
    %s50 = smul.addr %s49, 8
    %s51 = scalar_lea.vmem %s1, %s50
    %s52 = sadd.s32 0, 0
    %p53 = scmp.lt.s32.totalorder %s52, 0
    %s54 = scalar_select %p53, %s52, 0
    %s55 = smul.u32 2, %s54
    %p56 = scmp.lt.s32.totalorder %s55, 1
    %s57 = scalar_select %p56, %s55, 1
    %s58 = smul.addr %s57, 8
    %s59 = scalar_lea.vmem %s0, %s58
    %s60 = sadd.s32 0, 0
    %p61 = scmp.lt.s32.totalorder %s60, 0
    %s62 = scalar_select %p61, %s60, 0
    %s63 = smul.u32 2, %s62
    %s64 = sadd.s32 0, 0
    %p65 = scmp.lt.s32.totalorder %s64, 0
    %s66 = scalar_select %p65, %s64, 0
    %s67 = smul.u32 2, %s66
    %p68 = scmp.lt.s32.totalorder %s67, 1
    %s69 = scalar_select %p68, %s67, 1
    %s70 = smul.addr %s69, 8
    %s71 = scalar_lea.vmem %s1, %s70
    %s72 = sadd.s32 0, 0
    %p73 = scmp.lt.s32.totalorder %s72, 0
    %s74 = scalar_select %p73, %s72, 0
    %s75 = smul.u32 2, %s74
    %p76 = scmp.eq.s32.totalorder 0, 0
    // Predicated region
    $region10: #{adaptive_wing_loss.1} parent=1 // pred_check
      %p77 = pneg %p76
    $region11: #{adaptive_wing_loss.1} parent=1 // pred_check_branch
      %79 = sbr.rel (%p77) target = $region13
    $region12: #{adaptive_wing_loss.1} parent=1 // pred_region
      %80 = vst [vmem:[#allocation2] sm:$0xff] 0.0
    $region13: #{adaptive_wing_loss.1} parent=1 // pred_fallthru
      _
    %v81 = vld [vmem:[%s59] sm:$0xff]
    %v82 = vld [vmem:[%s59 + $0x8] sm:$0xff]
    %v83 = vld [vmem:[%s71] sm:$0xff]
    %v84 = vld [vmem:[%s71 + $0x8] sm:$0xff]
    %v85 = vsub.f32 %v83, %v81
    %v86 = vsub.f32 %v84, %v82
    %v87 = vand.u32 2147483647, %v85
    %v88 = vand.u32 2147483647, %v86
    %v89 = vsub.f32 2.1, %v83
    %v90 = vsub.f32 2.1, %v84
    %vm91 = vcmp.lt.f32.partialorder %v87, 0.5
    %vm92 = vcmp.lt.f32.partialorder %v88, 0.5
    %v93 = vlog2.pop %v87
    %v94 = vmul.f32 %v93, 0.6931472
    %v95 = vlog2.pop %v88
    %v96 = vmul.f32 %v95, 0.6931472
    %v97 = vsel %vm91, %v94, -0.6931472
    %v98 = vsel %vm92, %v96, -0.6931472
    %v99 = vmul.f32 %v89, %v97
    %v100 = vmul.f32 %v90, %v98
    %v101 = vmul.f32 %v99, 1.442695
    %v102 = vpow.pop %v101
    %v103 = vmul.f32 %v100, 1.442695
    %v104 = vpow.pop %v103
    %v105 = vadd.f32 %v102, 1.0
    %v106 = vlog2.pop %v105
    %v107 = vmul.f32 %v106, 0.6931472
    %v108 = vmul.f32 -0.5, %v102
    %v109 = vadd.f32 %v108, 1.0
    %v110 = vmul.f32 %v109, %v102
    %v111 = vand.u32 2147483647, %v102
    %vm112 = vcmp.lt.f32.partialorder %v111, 0.0004427343
    %v113 = vsel %vm112, %v110, %v107
    %v114 = vadd.f32 %v104, 1.0
    %v115 = vlog2.pop %v114
    %v116 = vmul.f32 %v115, 0.6931472
    %v117 = vmul.f32 -0.5, %v104
    %v118 = vadd.f32 %v117, 1.0
    %v119 = vmul.f32 %v118, %v104
    %v120 = vand.u32 2147483647, %v104
    %vm121 = vcmp.lt.f32.partialorder %v120, 0.0004427343
    %v122 = vsel %vm121, %v119, %v116
    %v123 = vmul.f32 %v89, 28.0
    %v124 = vmul.f32 %v90, 28.0
    %v125 = vmul.f32 %v123, %v102
    %v126 = vmul.f32 %v124, %v104
    %v127 = vadd.f32 %v102, 1.0
    %v128 = vadd.f32 %v104, 1.0
    %v129 = vrcp.pop %v127
    %v130 = vrcp.pop %v128
    %v131 = vmul.f32 %v125, %v129
    %v132 = vmul.f32 %v126, %v130
    %v133 = vmul.f32 %v113, 14.0
    %v134 = vmul.f32 %v122, 14.0
    %v135 = vsub.f32 %v87, 0.5
    %v136 = vsub.f32 %v88, 0.5
    %v137 = vmul.f32 %v131, %v135
    %v138 = vmul.f32 %v132, %v136
    %v139 = vsel %vm91, 0.0, %v137
    %v140 = vsel %vm92, 0.0, %v138
    %v141 = vadd.f32 %v133, %v139
    %v142 = vadd.f32 %v134, %v140
    %v143 = vld [vmem:[#allocation2] sm:$0xff]
    %v144 = vadd.f32 %v141, %v142
    %v145 = vadd.f32 %v143, %v144
    %146 = vst [vmem:[#allocation2] sm:$0xff] %v145
    // Predicated region
    $region14: #{adaptive_wing_loss.1} parent=1 // pred_check
      %p147 = pneg %p76
    $region15: #{adaptive_wing_loss.1} parent=1 // pred_check_branch
      %149 = sbr.rel (%p147) target = $region17
    $region16: #{adaptive_wing_loss.1} parent=1 // pred_region
      %v150 = vld [vmem:[#allocation2] sm:$0xff]
      %151 = vadd.xlane.f32.xlu0 %v150
      %v152 = vpop.xlane.xlu0 %151
      %v153 = vrot.slane %v152, 4
      %v154 = vadd.f32 %v152, %v153
      %v155 = vrot.slane %v154, 2
      %v156 = vadd.f32 %v154, %v155
      %v157 = vrot.slane %v156, 1
      %v158 = vadd.f32 %v156, %v157
      %s159 = vtos %v158
      %s160 = scalar_lea.smem [#allocation3], 0
      %161 = sst [smem:[%s160]] %s159
    $region17: #{adaptive_wing_loss.1} parent=1 // pred_fallthru
      _
    // Predicated region
    $region18: #{adaptive_wing_loss.1} parent=1 // pred_check
      _
    $region19: #{adaptive_wing_loss.1} parent=1 // pred_check_branch
      %163 = sbr.rel (0) target = $region21
    $region20: #{adaptive_wing_loss.1} parent=1 // pred_region
      %s165 = ssub.s32 16, 16
      %166 = vsyncadd [#allocation4], %s165
      %169 = dma.smem_to_hbm [#allocation3], 16, %s2, [#allocation4]
    $region21: #{adaptive_wing_loss.1} parent=1 // pred_fallthru
      _
    // Predicated region
    $region22: #{adaptive_wing_loss.1} parent=1 // pred_check
      _
    $region23: #{adaptive_wing_loss.1} parent=1 // pred_check_branch
      %171 = sbr.rel (0) target = $region25
    $region24: #{adaptive_wing_loss.1} parent=1 // pred_region
      %172 = dma.done [#allocation4], 16
    $region25: #{adaptive_wing_loss.1} parent=1 // pred_fallthru
      _
    %173 = sfence
    %174 = vsyncpa [#allocation4], 1

</llo_original>
